<compile_context>
chip_gen: v5e
topology: v5e:2x2
jax: 0.10.0
libtpu: 0.0.40
codegen_flags: <defaults>
</compile_context>

<pallas_src>
import functools

import jax
import jax.numpy as jnp
from jax import lax
from jax.experimental import pallas as pl
from jax.experimental.pallas import tpu as pltpu


def _hash_keep(rows_u32, seed_u32, keep_threshold):
    """Stateless lowbias32-style hash of (seed, row) -> bool keep mask.

    `rows_u32`: uint32 array of global row indices (shape (..., 1)).
    `keep_threshold`: static int in [0, 2**23]; P(keep) = 1 - threshold / 2**23.
    Works both inside a Pallas kernel and in plain JAX (fallback path).
    """
    h = rows_u32 + seed_u32 * jnp.uint32(2654435761)      # Knuth multiplicative mix
    h = h ^ (h >> jnp.uint32(16))
    h = h * jnp.uint32(0x7FEB352D)
    h = h ^ (h >> jnp.uint32(15))
    h = h * jnp.uint32(0x846CA68B)
    h = h ^ (h >> jnp.uint32(16))
    # 23 uniform bits, compared in the integer domain (no casts, no fmul).
    return (h >> jnp.uint32(9)) >= jnp.uint32(keep_threshold)


def _char_dropout_kernel(seed_ref, x_ref, o_ref, *, keep_threshold):
    tn = x_ref.shape[0]                                    # rows in this block

    # Global row index for every row of the block (2-D iota; TPU needs >= 2D).
    local = lax.broadcasted_iota(jnp.int32, (tn, 1), 0).astype(jnp.uint32)
    base = (pl.program_id(0) * tn).astype(jnp.uint32)      # row-grid axis only
    rows = local + base                                    # (tn, 1) uint32

    keep = _hash_keep(rows, seed_ref[0].astype(jnp.uint32), keep_threshold)

    xb = x_ref[...]                                        # (tn, tc)
    # Select (not multiply): no extra cast needed for sub-f32 dtypes (v5e VPU).
    o_ref[...] = jnp.where(keep, xb, jnp.zeros((), dtype=xb.dtype))


def _tile_plan(n, c, itemsize):
    """Pick (tn, tc, grid_n, grid_c) for the 2-D streaming grid."""
    pack = {1: 32, 2: 16}.get(itemsize, 8)                 # native sublane packing
    TILE_BUDGET = 8 * 1024 * 1024                          # bytes per input tile

    # Lane (C) tiling: full dim when it fits, else a 128-aligned slice.
    if c * itemsize <= TILE_BUDGET:
        tc = c
    else:
        tc = max(128, ((TILE_BUDGET // itemsize) // 128) * 128)
    grid_c = pl.cdiv(c, tc)

    # Sublane (row) tiling within the remaining budget.
    rows_fit = max(1, TILE_BUDGET // max(1, tc * itemsize))
    if rows_fit >= n:
        tn = n                                             # full-dim block: always legal
    else:
        tn = max(pack, (rows_fit // pack) * pack)          # packing-aligned tile

    # Megacore (v7x): keep >= 4 grid steps for big arrays so the "parallel"
    # axes actually shard across both TensorCores; neutral on v5e/v6e.
    MIN_STEPS = 4
    total_bytes = n * c * itemsize
    if total_bytes > 4 * 1024 * 1024 and grid_c * pl.cdiv(n, tn) < MIN_STEPS:
        want_row_steps = -(-MIN_STEPS // grid_c)           # ceil
        tn_cap = -(-n // want_row_steps)                   # ceil(n / steps)
        if tn_cap < n:
            tn_cap = max(pack, (tn_cap // pack) * pack)
        tn = min(tn, max(pack, tn_cap))

    grid_n = pl.cdiv(n, tn)
    return tn, tc, grid_n, grid_c


def character_dropout(x, seed, dropout_rate=0.05, training=True, donate=False):
    """Pallas CharacterDropout.forward: drops whole rows along axis 0 of x."""
    if not training or not dropout_rate:
        return x                                           # identity passthrough

    orig_shape = x.shape
    n = int(orig_shape[0])
    c = 1
    for d in orig_shape[1:]:
        c *= int(d)
    c = max(c, 1)
    x2 = x.reshape(n, c)                                   # lane-dense 2-D slab
    itemsize = x2.dtype.itemsize

    # Static integer keep-threshold: P(keep) = 1 - dropout_rate (to within 2^-23).
    keep_threshold = min(1 << 23, max(0, int(round(float(dropout_rate) * (1 << 23)))))
    seed_u32 = int(seed) & 0xFFFFFFFF

    # Sub-128 trailing dim -> masked partial stores; fall back to plain XLA
    # with the identical hash / mask (bandwidth-bound either way at this size).
    if c < 128:
        rows = jnp.arange(n, dtype=jnp.uint32).reshape(n, 1)
        keep = _hash_keep(rows, jnp.uint32(seed_u32), keep_threshold)
        y2 = jnp.where(keep, x2, jnp.zeros((), dtype=x2.dtype))
        return y2.reshape(orig_shape)

    tn, tc, grid_n, grid_c = _tile_plan(n, c, itemsize)

    seed_arr = jnp.asarray([seed_u32], dtype=jnp.uint32)
    kernel = functools.partial(_char_dropout_kernel, keep_threshold=keep_threshold)

    y2 = pl.pallas_call(
        kernel,
        out_shape=jax.ShapeDtypeStruct((n, c), x2.dtype),
        grid_spec=pltpu.PrefetchScalarGridSpec(
            num_scalar_prefetch=1,                         # seed lives in SMEM
            grid=(grid_n, grid_c),
            in_specs=[pl.BlockSpec((tn, tc), lambda i, j, seed_ref: (i, j))],
            out_specs=pl.BlockSpec((tn, tc), lambda i, j, seed_ref: (i, j)),
        ),
        # Stateless per-row hash -> no inter-step carry on either axis.
        compiler_params=pltpu.CompilerParams(
            dimension_semantics=("parallel", "parallel"),
            vmem_limit_bytes=48 * 1024 * 1024,             # explicit; < v7x 64 MiB physical
        ),
        cost_estimate=pl.CostEstimate(
            flops=n * c,
            transcendentals=0,
            bytes_accessed=2 * n * c * itemsize + seed_arr.nbytes,
        ),
        input_output_aliases=({1: 0} if donate else {}),
    )(seed_arr, x2)

    return y2.reshape(orig_shape)


if __name__ == "__main__":
    key = jax.random.PRNGKey(0)
    N, S, D = 8, 16, 32                                    # c = 512 >= 128 -> kernel path
    x = jax.random.normal(key, (N, S, D), dtype=jnp.float32)

    # Training mode: per-character dropout (higher rate so drops are likely at tiny N).
    y = character_dropout(x, seed=0, dropout_rate=0.25, training=True)
    y = jax.block_until_ready(y)

    # Sanity: every character row is either passed through unchanged or fully zeroed.
    row_kept = jnp.all(y == x, axis=(1, 2))
    row_zero = jnp.all(y == 0.0, axis=(1, 2))
    assert bool(jnp.all(jnp.logical_or(row_kept, row_zero))), "rows must be kept or zeroed"
    assert y.shape == x.shape and y.dtype == x.dtype

    # Determinism: same seed -> same mask.
    y_again = jax.block_until_ready(
        character_dropout(x, seed=0, dropout_rate=0.25, training=True))
    assert bool(jnp.all(y == y_again))

    # Small-C fallback path (c = 32 < 128): same row-kept-or-zeroed property.
    x_small = jax.random.normal(key, (8, 4, 8), dtype=jnp.float32)
    y_small = jax.block_until_ready(
        character_dropout(x_small, seed=3, dropout_rate=0.25, training=True))
    rk = jnp.all(y_small == x_small, axis=(1, 2))
    rz = jnp.all(y_small == 0.0, axis=(1, 2))
    assert bool(jnp.all(jnp.logical_or(rk, rz)))

    # Eval mode / zero rate: identity passthrough (matches `if not self.training ...`).
    assert character_dropout(x, seed=0, dropout_rate=0.25, training=False) is x
    assert character_dropout(x, seed=0, dropout_rate=0.0, training=True) is x

    print("KERNEL_OK")
</pallas_src>

<mosaic_0001>
module attributes {stable_mosaic.version = 11 : i64} {
  func.func @_char_dropout_kernel(%arg0: i32, %arg1: i32, %arg2: memref<1xi32, #tpu.memory_space<smem>>, %arg3: memref<8x512xf32, #tpu.memory_space<vmem>>, %arg4: memref<8x512xf32, #tpu.memory_space<vmem>>) attributes {dimension_semantics = [#tpu.dimension_semantics<parallel>, #tpu.dimension_semantics<parallel>], iteration_bounds = array<i64: 1, 1>, scalar_prefetch = 1 : i64, scratch_operands = 0 : i64, tpu.core_type = #tpu.core_type<tc>, window_params = [{transform_indices = @transform_0, window_bounds = array<i64: 8, 512>}, {transform_indices = @transform_1, window_bounds = array<i64: 8, 512>}]} {
    %0 = tpu.iota {dimensions = array<i32: 0>} : vector<8x1xi32>
    %c8_i32 = arith.constant 8 : i32
    %1 = arith.muli %arg0, %c8_i32 : i32
    %2 = vector.broadcast %1 : i32 to vector<8x1xi32>
    %3 = arith.addi %0, %2 : vector<8x1xi32>
    %c0 = arith.constant 0 : index
    %4 = memref.load %arg2[%c0] : memref<1xi32, #tpu.memory_space<smem>>
    %c-1640531535_i32 = arith.constant -1640531535 : i32
    %5 = arith.muli %4, %c-1640531535_i32 : i32
    %6 = vector.broadcast %5 : i32 to vector<8x1xi32>
    %7 = arith.addi %3, %6 : vector<8x1xi32>
    %c16_i32 = arith.constant 16 : i32
    %8 = vector.broadcast %c16_i32 : i32 to vector<8x1xi32>
    %9 = arith.shrui %7, %8 : vector<8x1xi32>
    %10 = arith.xori %7, %9 : vector<8x1xi32>
    %c2146121005_i32 = arith.constant 2146121005 : i32
    %11 = vector.broadcast %c2146121005_i32 : i32 to vector<8x1xi32>
    %12 = arith.muli %10, %11 : vector<8x1xi32>
    %c15_i32 = arith.constant 15 : i32
    %13 = vector.broadcast %c15_i32 : i32 to vector<8x1xi32>
    %14 = arith.shrui %12, %13 : vector<8x1xi32>
    %15 = arith.xori %12, %14 : vector<8x1xi32>
    %c-2073254261_i32 = arith.constant -2073254261 : i32
    %16 = vector.broadcast %c-2073254261_i32 : i32 to vector<8x1xi32>
    %17 = arith.muli %15, %16 : vector<8x1xi32>
    %c16_i32_0 = arith.constant 16 : i32
    %18 = vector.broadcast %c16_i32_0 : i32 to vector<8x1xi32>
    %19 = arith.shrui %17, %18 : vector<8x1xi32>
    %20 = arith.xori %17, %19 : vector<8x1xi32>
    %c9_i32 = arith.constant 9 : i32
    %21 = vector.broadcast %c9_i32 : i32 to vector<8x1xi32>
    %22 = arith.shrui %20, %21 : vector<8x1xi32>
    %c2097152_i32 = arith.constant 2097152 : i32
    %23 = vector.broadcast %c2097152_i32 : i32 to vector<8x1xi32>
    %24 = arith.cmpi uge, %22, %23 : vector<8x1xi32>
    %c0_1 = arith.constant 0 : index
    %c0_2 = arith.constant 0 : index
    %25 = vector.load %arg3[%c0_1, %c0_2] : memref<8x512xf32, #tpu.memory_space<vmem>>, vector<8x512xf32>
    %cst = arith.constant 0.000000e+00 : f32
    %26 = vector.shape_cast %24 : vector<8x1xi1> to vector<8x1xi1>
    %27 = vector.broadcast %26 : vector<8x1xi1> to vector<8x512xi1>
    %28 = vector.broadcast %cst : f32 to vector<8x512xf32>
    %29 = arith.select %27, %25, %28 : vector<8x512xi1>, vector<8x512xf32>
    %c0_3 = arith.constant 0 : index
    %c0_4 = arith.constant 0 : index
    %30 = vector.load %arg4[%c0_3, %c0_4] : memref<8x512xf32, #tpu.memory_space<vmem>>, vector<8x512xf32>
    tpu.vector_store %arg4[%c0_3, %c0_4], %29 {strides = array<i32>} : memref<8x512xf32, #tpu.memory_space<vmem>>, vector<8x512xf32>,
    return
  }
  func.func @transform_0(%arg0: i32, %arg1: i32, %arg2: memref<1xi32, #tpu.memory_space<smem>>) -> (i32, i32) {
    %c0_i32 = arith.constant 0 : i32
    return %arg0, %arg1 : i32, i32
  }
  func.func @transform_1(%arg0: i32, %arg1: i32, %arg2: memref<1xi32, #tpu.memory_space<smem>>) -> (i32, i32) {
    %c0_i32 = arith.constant 0 : i32
    return %arg0, %arg1 : i32, i32
  }
}

</mosaic_0001>

<llo_original>
// kernel: tpu_custom_call.1
$region0: #{tpu_custom_call.1}
  #allocation0 [shape = 'u32[]', space=smem, size = 0x4, offset = 0x4, fixed_abs, tag = 'smem constant byte address 0x4 - core index']
  #allocation1 [shape = 'u32[72,128]{1,0:T(1,128)}', space=vmem, size = 0x9000, scoped, tag = 'internal scratch']
  #allocation2 [shape = 's32[1]{0}', space=sflag, size = 0x4, scoped, tag = 'scoped memory for tpu_custom_call.1']
  #allocation3 [shape = 'u32[1]{0:T(128)S(6)}', space=smem, size = 0x200, scoped, tag = 'prefetched SMEM operand 0']
  %s0 = inlined_call_operand.<no memory space> [shape: u32[1], index: 0, kind: input, shape index: {}]
  %s1 = inlined_call_operand.hbm [shape: f32[8,512], index: 1, kind: input, shape index: {}]
  %s2 = inlined_call_operand.hbm [shape: f32[8,512], index: 2, kind: output, shape index: {}]
  %s3 = sld [smem:[#allocation0]]
  $region18: #{tpu_custom_call.1} parent=0
    _
  %s5 = ssub.s32 1, %s3
  %s6 = scalar_select 0, %s5, %s3
  %7 = sst [smem:[#allocation3]] %s0
  $region1: #{tpu_custom_call.1} parent=0
    #allocation4 [shape = 'u8[16384]{0}', space=vmem, size = 0x4000, scoped, tag = 'input window, operand 1, single buffered']
    #allocation5 [shape = 's32[1]{0}', space=sflag, size = 0x4, scoped, tag = 'scoped memory for tpu_custom_call.1']
    #allocation6 [shape = 's32[1]{0}', space=sflag, size = 0x4, scoped, tag = 'scoped memory for tpu_custom_call.1']
    #allocation7 [shape = 'u8[16384]{0}', space=vmem, size = 0x4000, scoped, tag = 'output window, operand 0, single buffered']
    %8 = vsyncpa [#allocation5], 0
    %9 = vsyncpa [#allocation6], 0
    // Predicated region
    $region2: #{tpu_custom_call.1} parent=1 // pred_check
      _
    $region3: #{tpu_custom_call.1} parent=1 // pred_check_branch
      %11 = sbr.rel (0) target = $region5
    $region4: #{tpu_custom_call.1} parent=1 // pred_region
      %13 = vsyncadd [#allocation5], 0
      %s15 = sshll.u32 %s1, 4
      %s16 = int_to_ptr.hbm [resolvable:$true] %s15
      %s17 = sshll.u32 [#allocation4], 4
      %s18 = int_to_ptr.vmem [resolvable:$true] %s17
      %20 = dma.hbm_to_vmem [thread:$0]  %s16, 512, %s18, [#allocation5]
    $region5: #{tpu_custom_call.1} parent=1 // pred_fallthru
      _
    // Predicated region
    $region6: #{tpu_custom_call.1} parent=1 // pred_check
      _
    $region7: #{tpu_custom_call.1} parent=1 // pred_check_branch
      %22 = sbr.rel (0) target = $region9
    $region8: #{tpu_custom_call.1} parent=1 // pred_region
      %24 = dma.done [#allocation5], 512
    $region9: #{tpu_custom_call.1} parent=1 // pred_fallthru
      _
    %v25 = vlaneseq
    %v26 = vshrl.u32 %v25, 7
    %s27 = smul.u32 0, 8
    %v28 = vstv %s27
    %v29 = vadd.s32 %v26, %v28
    %s30 = sld [smem:[#allocation3]]
    %s31 = smul.u32 %s30, 2654435761
    %v32 = vstv %s31
    %v33 = vadd.s32 %v29, %v32
    %v34 = vshrl.u32 %v33, 16
    %v35 = vxor.u32 %v33, %v34
    %v36 = vmul.u32 %v35, 2146121005
    %v37 = vshrl.u32 %v36, 15
    %v38 = vxor.u32 %v36, %v37
    %v39 = vmul.u32 %v38, 2221713035
    %v40 = vshrl.u32 %v39, 16
    %v41 = vxor.u32 %v39, %v40
    %v42 = vshrl.u32 %v41, 9
    %v43 = vadd.s32 %v42, 2147483648
    %vm45 = vcmp.ge.s32.totalorder %v43, 2149580800
    %v46 = vld [vmem:[#allocation4] sm:$0xff]
    %v47 = vld [vmem:[#allocation4 + $0x8] sm:$0xff]
    %v48 = vld [vmem:[#allocation4 + $0x10] sm:$0xff]
    %v49 = vld [vmem:[#allocation4 + $0x18] sm:$0xff]
    %v50 = vsel %vm45, 1, 0
    %vm51 = vcmp.eq.s32.totalorder %v50, 1
    %v52 = vsel %vm51, %v46, 0.0
    %v53 = vsel %vm51, %v47, 0.0
    %v54 = vsel %vm51, %v48, 0.0
    %v55 = vsel %vm51, %v49, 0.0
    %56 = vst [vmem:[#allocation7] sm:$0xff] %v52
    %57 = vst [vmem:[#allocation7 + $0x8] sm:$0xff] %v53
    %58 = vst [vmem:[#allocation7 + $0x10] sm:$0xff] %v54
    %59 = vst [vmem:[#allocation7 + $0x18] sm:$0xff] %v55
    // Predicated region
    $region10: #{tpu_custom_call.1} parent=1 // pred_check
      _
    $region11: #{tpu_custom_call.1} parent=1 // pred_check_branch
      %61 = sbr.rel (0) target = $region13
    $region12: #{tpu_custom_call.1} parent=1 // pred_region
      %63 = vsyncadd [#allocation6], 0
      %s65 = sshll.u32 [#allocation7], 4
      %s66 = int_to_ptr.vmem [resolvable:$true] %s65
      %s67 = sshll.u32 %s2, 4
      %s68 = int_to_ptr.hbm [resolvable:$true] %s67
      %70 = dma.vmem_to_hbm [thread:$0]  %s66, 512, %s68, [#allocation6]
    $region13: #{tpu_custom_call.1} parent=1 // pred_fallthru
      _
    // Predicated region
    $region14: #{tpu_custom_call.1} parent=1 // pred_check
      _
    $region15: #{tpu_custom_call.1} parent=1 // pred_check_branch
      %72 = sbr.rel (0) target = $region17
    $region16: #{tpu_custom_call.1} parent=1 // pred_region
      %74 = dma.done [#allocation6], 512
    $region17: #{tpu_custom_call.1} parent=1 // pred_fallthru
      _
    %75 = vsyncpa [#allocation5], 1
    %76 = vsyncpa [#allocation6], 1

</llo_original>
